<compile_context>
chip_gen: v5e
topology: v5e:2x2
jax: 0.10.0
libtpu: 0.0.40
codegen_flags: <defaults>
</compile_context>

<pallas_src>
import jax
import jax.numpy as jnp
from jax.experimental import pallas as pl
from jax.experimental.pallas import tpu as pltpu


def _round_up(n, m):
    return (n + m - 1) // m * m


def _tpu_vmem_and_cores():
    """(per-core VMEM capacity bytes, has_two_tensorcores) with safe fallbacks."""
    vmem_cap = 128 << 20
    try:
        vmem_cap = int(pltpu.get_tpu_info().vmem_capacity_bytes)
    except Exception:
        pass
    two_cores = False
    try:
        kind = jax.devices()[0].device_kind.lower()
        two_cores = "v7" in kind
    except Exception:
        pass
    if vmem_cap <= (64 << 20):   # 64 MiB/TC parts are the 2-TC generation
        two_cores = True
    return vmem_cap, two_cores


def _compose_kernel(x_ref, w1_ref, b1_ref, w2_ref, b2_ref,
                    first_ref, second_ref):
    # In-kernel cast of the streamed x tile to the MXU compute dtype (bf16);
    # the HBM read stays f32-narrow (no wrapper-side cast copy).
    x = x_ref[...].astype(w1_ref.dtype)
    # first(x) = x @ W1 + b1 : bf16 operands, f32 accumulation on the MXU,
    # f32 bias add on the VPU (v5e has no bf16 VALU).
    h = jnp.dot(x, w1_ref[...], preferred_element_type=jnp.float32) + b1_ref[...]
    first_ref[...] = h.astype(first_ref.dtype)             # == self.first_out
    # second(h) = h @ W2 + b2 : h re-cast to the compute dtype for the MXU.
    y = jnp.dot(h.astype(w2_ref.dtype), w2_ref[...],
                preferred_element_type=jnp.float32) + b2_ref[...]
    second_ref[...] = y.astype(second_ref.dtype)            # == self.second_out


def custom_compose(x, w1, b1, w2, b2, *, tm=1024,
                   compute_dtype=jnp.bfloat16,
                   first_out_dtype=None,
                   second_out_dtype=None):
    """Fused second(first(x)), returning (first_out, second_out).

    x : [N, D_in], w1: [D_in, D_hid], b1: [D_hid] or [1, D_hid],
    w2: [D_hid, D_out], b2: [D_out] or [1, D_out].
    """
    N, d_in = x.shape
    d_hid = w1.shape[1]
    d_out = w2.shape[1]
    assert w1.shape == (d_in, d_hid) and w2.shape == (d_hid, d_out)

    first_dtype = x.dtype if first_out_dtype is None else first_out_dtype
    second_dtype = x.dtype if second_out_dtype is None else second_out_dtype
    c_size = jnp.dtype(compute_dtype).itemsize
    x_size = jnp.dtype(x.dtype).itemsize

    # Weights/biases are tiny; cast once in the wrapper (biases stay f32).
    w1_c = w1.astype(compute_dtype)
    w2_c = w2.astype(compute_dtype)
    b1_f = jnp.asarray(b1).reshape(1, d_hid).astype(jnp.float32)
    b2_f = jnp.asarray(b2).reshape(1, d_out).astype(jnp.float32)

    # ---- generation-aware VMEM policy ---------------------------------------
    vmem_cap, two_cores = _tpu_vmem_and_cores()
    if vmem_cap >= (100 << 20):           # v5e / v6e: 128 MiB physical VMEM
        budget = 96 << 20
        limit_cap = 100 << 20
    else:                                 # v7x: 64 MiB per TensorCore
        budget = min(36 << 20, max(16 << 20, vmem_cap // 2))
        limit_cap = min(52 << 20, max(32 << 20, vmem_cap - (12 << 20)))

    # ---- row-tile selection --------------------------------------------------
    # Per-row VMEM: double-buffered x tile (input dtype) + both output tiles,
    # plus the transient bf16 x cast and the f32/bf16 intermediate h.
    row_bytes = (2 * d_in * x_size
                 + d_in * c_size
                 + d_hid * (4 + c_size)
                 + 2 * d_hid * jnp.dtype(first_dtype).itemsize
                 + 2 * d_out * jnp.dtype(second_dtype).itemsize)
    weight_bytes = 2 * ((d_in * d_hid + d_hid * d_out) * c_size
                        + (d_hid + d_out) * 4)
    tm_fit = max(16, (budget - weight_bytes) // max(row_bytes, 1) // 16 * 16)

    # Balanced tiles: pick the tile count first, then size each tile, so row
    # waste stays below one tile even for awkward N.
    n_rows16 = _round_up(max(N, 1), 16)
    tm_target = max(16, min(_round_up(tm, 16), tm_fit))
    n_tiles = max(1, pl.cdiv(n_rows16, tm_target))
    if two_cores and N >= 128:
        # Only force a split where there are actually two TensorCores to shard
        # the "parallel" row axis across.
        n_tiles = max(n_tiles, 2)
    tm = max(16, min(_round_up(pl.cdiv(n_rows16, n_tiles), 16), tm_target))
    grid = (pl.cdiv(N, tm),)

    cost = pl.CostEstimate(
        flops=2 * N * (d_in * d_hid + d_hid * d_out),
        transcendentals=0,
        bytes_accessed=(x.size * x_size
                        + (w1_c.size + w2_c.size) * c_size
                        + (b1_f.size + b2_f.size) * 4
                        + N * d_hid * jnp.dtype(first_dtype).itemsize
                        + N * d_out * jnp.dtype(second_dtype).itemsize))

    vmem_limit = int(min(limit_cap,
                         max(32 << 20, 2 * (weight_bytes + tm * row_bytes))))

    first_out, second_out = pl.pallas_call(
        _compose_kernel,
        out_shape=(jax.ShapeDtypeStruct((N, d_hid), first_dtype),
                   jax.ShapeDtypeStruct((N, d_out), second_dtype)),
        grid_spec=pltpu.PrefetchScalarGridSpec(
            num_scalar_prefetch=0,
            grid=grid,
            in_specs=[
                # x streamed in its native dtype; cast happens in-kernel.
                pl.BlockSpec((tm, d_in), lambda i: (i, 0)),
                # Resident weights / biases (constant block index).
                pl.BlockSpec((d_in, d_hid), lambda i: (0, 0)),
                pl.BlockSpec((1, d_hid), lambda i: (0, 0)),
                pl.BlockSpec((d_hid, d_out), lambda i: (0, 0)),
                pl.BlockSpec((1, d_out), lambda i: (0, 0)),
            ],
            out_specs=[
                pl.BlockSpec((tm, d_hid), lambda i: (i, 0)),   # first_out
                pl.BlockSpec((tm, d_out), lambda i: (i, 0)),   # second_out
            ],
        ),
        compiler_params=pltpu.CompilerParams(
            dimension_semantics=("parallel",),
            vmem_limit_bytes=vmem_limit),
        cost_estimate=cost,
    )(x, w1_c, b1_f, w2_c, b2_f)

    return first_out, second_out


if __name__ == "__main__":
    key = jax.random.PRNGKey(0)
    k_x, k_w1, k_b1, k_w2, k_b2 = jax.random.split(key, 5)

    # Small shapes consistent with an irreps-feature composition:
    # rows = nodes/samples, cols = flattened irreps features.
    N, D_IN, D_HID, D_OUT = 512, 32, 64, 48

    x = jax.random.normal(k_x, (N, D_IN), dtype=jnp.float32)
    # Deterministic synthetic parameters (no checkpoint load).
    w1 = jax.random.normal(k_w1, (D_IN, D_HID), dtype=jnp.float32) / jnp.sqrt(D_IN)
    b1 = jax.random.normal(k_b1, (1, D_HID), dtype=jnp.float32) * 0.1
    w2 = jax.random.normal(k_w2, (D_HID, D_OUT), dtype=jnp.float32) / jnp.sqrt(D_HID)
    b2 = jax.random.normal(k_b2, (1, D_OUT), dtype=jnp.float32) * 0.1

    first_out, second_out = custom_compose(x, w1, b1, w2, b2)
    jax.block_until_ready((first_out, second_out))
    assert first_out.shape == (N, D_HID) and second_out.shape == (N, D_OUT)

    # Reference with matching precision (bf16 operands, f32 accumulation).
    xb, w1b, w2b = (t.astype(jnp.bfloat16) for t in (x, w1, w2))
    ref_first = jnp.dot(xb, w1b, preferred_element_type=jnp.float32) + b1
    ref_second = jnp.dot(ref_first.astype(jnp.bfloat16), w2b,
                         preferred_element_type=jnp.float32) + b2
    assert jnp.allclose(first_out, ref_first, atol=1e-2, rtol=1e-2)
    assert jnp.allclose(second_out, ref_second, atol=1e-2, rtol=1e-2)

    # Loose sanity check vs the pure-f32 composition second(first(x)).
    ref_first_f32 = x @ w1 + b1
    ref_second_f32 = ref_first_f32 @ w2 + b2
    assert jnp.allclose(first_out, ref_first_f32, atol=0.2, rtol=0.1)
    assert jnp.allclose(second_out, ref_second_f32, atol=0.2, rtol=0.1)

    print("KERNEL_OK")
</pallas_src>

<mosaic_0001>
module attributes {stable_mosaic.version = 11 : i64} {
  func.func @_compose_kernel(%arg0: i32, %arg1: memref<512x32xf32, #tpu.memory_space<vmem>>, %arg2: memref<32x64xbf16, #tpu.memory_space<vmem>>, %arg3: memref<1x64xf32, #tpu.memory_space<vmem>>, %arg4: memref<64x48xbf16, #tpu.memory_space<vmem>>, %arg5: memref<1x48xf32, #tpu.memory_space<vmem>>, %arg6: memref<512x64xf32, #tpu.memory_space<vmem>>, %arg7: memref<512x48xf32, #tpu.memory_space<vmem>>) attributes {dimension_semantics = [#tpu.dimension_semantics<parallel>], iteration_bounds = array<i64: 1>, scalar_prefetch = 0 : i64, scratch_operands = 0 : i64, tpu.core_type = #tpu.core_type<tc>, window_params = [{transform_indices = @transform_0, window_bounds = array<i64: 512, 32>}, {pipeline_mode = #tpu.pipeline_mode<synchronous>, transform_indices = @transform_1, window_bounds = array<i64: 32, 64>}, {pipeline_mode = #tpu.pipeline_mode<synchronous>, transform_indices = @transform_2, window_bounds = array<i64: 1, 64>}, {pipeline_mode = #tpu.pipeline_mode<synchronous>, transform_indices = @transform_3, window_bounds = array<i64: 64, 48>}, {pipeline_mode = #tpu.pipeline_mode<synchronous>, transform_indices = @transform_4, window_bounds = array<i64: 1, 48>}, {transform_indices = @transform_5, window_bounds = array<i64: 512, 64>}, {transform_indices = @transform_6, window_bounds = array<i64: 512, 48>}]} {
    %c0 = arith.constant 0 : index
    %c0_0 = arith.constant 0 : index
    %0 = vector.load %arg1[%c0, %c0_0] : memref<512x32xf32, #tpu.memory_space<vmem>>, vector<512x32xf32>
    %1 = arith.truncf %0 : vector<512x32xf32> to vector<512x32xbf16>
    %c0_1 = arith.constant 0 : index
    %c0_2 = arith.constant 0 : index
    %2 = vector.load %arg2[%c0_1, %c0_2] : memref<32x64xbf16, #tpu.memory_space<vmem>>, vector<32x64xbf16>
    %cst = arith.constant dense<0.000000e+00> : vector<512x64xf32>
    %3 = tpu.matmul %1, %2, %cst {dimension_numbers = #tpu.dot_dimension_numbers<[1], [0], [0], [1], [0, 0, 1, 1], [], []>} : vector<512x32xbf16>, vector<32x64xbf16>, vector<512x64xf32> -> vector<512x64xf32>
    %c0_3 = arith.constant 0 : index
    %c0_4 = arith.constant 0 : index
    %4 = vector.load %arg3[%c0_3, %c0_4] : memref<1x64xf32, #tpu.memory_space<vmem>>, vector<1x64xf32>
    %5 = vector.broadcast %4 : vector<1x64xf32> to vector<512x64xf32>
    %6 = arith.addf %3, %5 : vector<512x64xf32>
    %c0_5 = arith.constant 0 : index
    %c0_6 = arith.constant 0 : index
    %7 = vector.load %arg6[%c0_5, %c0_6] : memref<512x64xf32, #tpu.memory_space<vmem>>, vector<512x64xf32>
    tpu.vector_store %arg6[%c0_5, %c0_6], %6 {strides = array<i32>} : memref<512x64xf32, #tpu.memory_space<vmem>>, vector<512x64xf32>,
    %8 = arith.truncf %6 : vector<512x64xf32> to vector<512x64xbf16>
    %c0_7 = arith.constant 0 : index
    %c0_8 = arith.constant 0 : index
    %9 = vector.load %arg4[%c0_7, %c0_8] : memref<64x48xbf16, #tpu.memory_space<vmem>>, vector<64x48xbf16>
    %cst_9 = arith.constant dense<0.000000e+00> : vector<512x48xf32>
    %10 = tpu.matmul %8, %9, %cst_9 {dimension_numbers = #tpu.dot_dimension_numbers<[1], [0], [0], [1], [0, 0, 1, 1], [], []>} : vector<512x64xbf16>, vector<64x48xbf16>, vector<512x48xf32> -> vector<512x48xf32>
    %c0_10 = arith.constant 0 : index
    %c0_11 = arith.constant 0 : index
    %11 = vector.load %arg5[%c0_10, %c0_11] : memref<1x48xf32, #tpu.memory_space<vmem>>, vector<1x48xf32>
    %12 = vector.broadcast %11 : vector<1x48xf32> to vector<512x48xf32>
    %13 = arith.addf %10, %12 : vector<512x48xf32>
    %c0_12 = arith.constant 0 : index
    %c0_13 = arith.constant 0 : index
    %14 = vector.load %arg7[%c0_12, %c0_13] : memref<512x48xf32, #tpu.memory_space<vmem>>, vector<512x48xf32>
    tpu.vector_store %arg7[%c0_12, %c0_13], %13 {strides = array<i32>} : memref<512x48xf32, #tpu.memory_space<vmem>>, vector<512x48xf32>,
    return
  }
  func.func @transform_0(%arg0: i32) -> (i32, i32) {
    %c0_i32 = arith.constant 0 : i32
    %c0_i32_0 = arith.constant 0 : i32
    return %arg0, %c0_i32 : i32, i32
  }
  func.func @transform_1(%arg0: i32) -> (i32, i32) {
    %c0_i32 = arith.constant 0 : i32
    %c0_i32_0 = arith.constant 0 : i32
    %c0_i32_1 = arith.constant 0 : i32
    return %c0_i32, %c0_i32_0 : i32, i32
  }
  func.func @transform_2(%arg0: i32) -> (i32, i32) {
    %c0_i32 = arith.constant 0 : i32
    %c0_i32_0 = arith.constant 0 : i32
    %c0_i32_1 = arith.constant 0 : i32
    return %c0_i32, %c0_i32_0 : i32, i32
  }
  func.func @transform_3(%arg0: i32) -> (i32, i32) {
    %c0_i32 = arith.constant 0 : i32
    %c0_i32_0 = arith.constant 0 : i32
    %c0_i32_1 = arith.constant 0 : i32
    return %c0_i32, %c0_i32_0 : i32, i32
  }
  func.func @transform_4(%arg0: i32) -> (i32, i32) {
    %c0_i32 = arith.constant 0 : i32
    %c0_i32_0 = arith.constant 0 : i32
    %c0_i32_1 = arith.constant 0 : i32
    return %c0_i32, %c0_i32_0 : i32, i32
  }
  func.func @transform_5(%arg0: i32) -> (i32, i32) {
    %c0_i32 = arith.constant 0 : i32
    %c0_i32_0 = arith.constant 0 : i32
    return %arg0, %c0_i32 : i32, i32
  }
  func.func @transform_6(%arg0: i32) -> (i32, i32) {
    %c0_i32 = arith.constant 0 : i32
    %c0_i32_0 = arith.constant 0 : i32
    return %arg0, %c0_i32 : i32, i32
  }
}

</mosaic_0001>

<llo_original>
// kernel: tpu_custom_call.1
$region0: #{tpu_custom_call.1}
  #allocation0 [shape = 'u32[]', space=smem, size = 0x4, offset = 0x4, fixed_abs, tag = 'smem constant byte address 0x4 - core index']
  #allocation1 [shape = 'u32[72,128]{1,0:T(1,128)}', space=vmem, size = 0x9000, scoped, tag = 'internal scratch']
  %s0 = inlined_call_operand.vmem [shape: f32[512,32], index: 0, kind: input, shape index: {}]
  %s1 = inlined_call_operand.vmem [shape: bf16[32,64], index: 1, kind: input, shape index: {}]
  %s2 = inlined_call_operand.vmem [shape: f32[1,64], index: 2, kind: input, shape index: {}]
  %s3 = inlined_call_operand.vmem [shape: bf16[64,48], index: 3, kind: input, shape index: {}]
  %s4 = inlined_call_operand.vmem [shape: f32[1,48], index: 4, kind: input, shape index: {}]
  %s5 = inlined_call_operand.vmem [shape: f32[512,64], index: 5, kind: output, shape index: {0}]
  %s6 = inlined_call_operand.vmem [shape: f32[512,48], index: 6, kind: output, shape index: {1}]
  %7 = xla_tuple %s5, %s6
  %s8 = sld [smem:[#allocation0]]
  $region38: #{tpu_custom_call.1} parent=0
    _
  %s10 = ssub.s32 1, %s8
  %s11 = scalar_select 0, %s10, %s8
  // Predicated region
  $region2: #{tpu_custom_call.1} parent=0 // pred_check
    _
  $region3: #{tpu_custom_call.1} parent=0 // pred_check_branch
    %13 = sbr.rel (0) target = $region5
  $region4: #{tpu_custom_call.1} parent=0 // pred_region
    _
  $region5: #{tpu_custom_call.1} parent=0 // pred_fallthru
    _
  // Predicated region
  $region6: #{tpu_custom_call.1} parent=0 // pred_check
    _
  $region7: #{tpu_custom_call.1} parent=0 // pred_check_branch
    %15 = sbr.rel (0) target = $region9
  $region8: #{tpu_custom_call.1} parent=0 // pred_region
    _
  $region9: #{tpu_custom_call.1} parent=0 // pred_fallthru
    _
  // Predicated region
  $region10: #{tpu_custom_call.1} parent=0 // pred_check
    _
  $region11: #{tpu_custom_call.1} parent=0 // pred_check_branch
    %17 = sbr.rel (0) target = $region13
  $region12: #{tpu_custom_call.1} parent=0 // pred_region
    _
  $region13: #{tpu_custom_call.1} parent=0 // pred_fallthru
    _
  // Predicated region
  $region14: #{tpu_custom_call.1} parent=0 // pred_check
    _
  $region15: #{tpu_custom_call.1} parent=0 // pred_check_branch
    %19 = sbr.rel (0) target = $region17
  $region16: #{tpu_custom_call.1} parent=0 // pred_region
    _
  $region17: #{tpu_custom_call.1} parent=0 // pred_fallthru
    _
  // Predicated region
  $region18: #{tpu_custom_call.1} parent=0 // pred_check
    _
  $region19: #{tpu_custom_call.1} parent=0 // pred_check_branch
    %21 = sbr.rel (0) target = $region21
  $region20: #{tpu_custom_call.1} parent=0 // pred_region
    _
  $region21: #{tpu_custom_call.1} parent=0 // pred_fallthru
    _
  %v23 = vld [vmem:[%s0] sm:$0xff]
  %v24 = vld [vmem:[%s0 + $0x8] sm:$0xff]
  %v25 = vld [vmem:[%s0 + $0x10] sm:$0xff]
  %v26 = vld [vmem:[%s0 + $0x18] sm:$0xff]
  %v27 = vld [vmem:[%s0 + $0x20] sm:$0xff]
  %v28 = vld [vmem:[%s0 + $0x28] sm:$0xff]
  %v29 = vld [vmem:[%s0 + $0x30] sm:$0xff]
  %v30 = vld [vmem:[%s0 + $0x38] sm:$0xff]
  %v31 = vld [vmem:[%s0 + $0x40] sm:$0xff]
  %v32 = vld [vmem:[%s0 + $0x48] sm:$0xff]
  %v33 = vld [vmem:[%s0 + $0x50] sm:$0xff]
  %v34 = vld [vmem:[%s0 + $0x58] sm:$0xff]
  %v35 = vld [vmem:[%s0 + $0x60] sm:$0xff]
  %v36 = vld [vmem:[%s0 + $0x68] sm:$0xff]
  %v37 = vld [vmem:[%s0 + $0x70] sm:$0xff]
  %v38 = vld [vmem:[%s0 + $0x78] sm:$0xff]
  %v39 = vld [vmem:[%s0 + $0x80] sm:$0xff]
  %v40 = vld [vmem:[%s0 + $0x88] sm:$0xff]
  %v41 = vld [vmem:[%s0 + $0x90] sm:$0xff]
  %v42 = vld [vmem:[%s0 + $0x98] sm:$0xff]
  %v43 = vld [vmem:[%s0 + $0xa0] sm:$0xff]
  %v44 = vld [vmem:[%s0 + $0xa8] sm:$0xff]
  %v45 = vld [vmem:[%s0 + $0xb0] sm:$0xff]
  %v46 = vld [vmem:[%s0 + $0xb8] sm:$0xff]
  %v47 = vld [vmem:[%s0 + $0xc0] sm:$0xff]
  %v48 = vld [vmem:[%s0 + $0xc8] sm:$0xff]
  %v49 = vld [vmem:[%s0 + $0xd0] sm:$0xff]
  %v50 = vld [vmem:[%s0 + $0xd8] sm:$0xff]
  %v51 = vld [vmem:[%s0 + $0xe0] sm:$0xff]
  %v52 = vld [vmem:[%s0 + $0xe8] sm:$0xff]
  %v53 = vld [vmem:[%s0 + $0xf0] sm:$0xff]
  %v54 = vld [vmem:[%s0 + $0xf8] sm:$0xff]
  %v55 = vld [vmem:[%s0 + $0x100] sm:$0xff]
  %v56 = vld [vmem:[%s0 + $0x108] sm:$0xff]
  %v57 = vld [vmem:[%s0 + $0x110] sm:$0xff]
  %v58 = vld [vmem:[%s0 + $0x118] sm:$0xff]
  %v59 = vld [vmem:[%s0 + $0x120] sm:$0xff]
  %v60 = vld [vmem:[%s0 + $0x128] sm:$0xff]
  %v61 = vld [vmem:[%s0 + $0x130] sm:$0xff]
  %v62 = vld [vmem:[%s0 + $0x138] sm:$0xff]
  %v63 = vld [vmem:[%s0 + $0x140] sm:$0xff]
  %v64 = vld [vmem:[%s0 + $0x148] sm:$0xff]
  %v65 = vld [vmem:[%s0 + $0x150] sm:$0xff]
  %v66 = vld [vmem:[%s0 + $0x158] sm:$0xff]
  %v67 = vld [vmem:[%s0 + $0x160] sm:$0xff]
  %v68 = vld [vmem:[%s0 + $0x168] sm:$0xff]
  %v69 = vld [vmem:[%s0 + $0x170] sm:$0xff]
  %v70 = vld [vmem:[%s0 + $0x178] sm:$0xff]
  %v71 = vld [vmem:[%s0 + $0x180] sm:$0xff]
  %v72 = vld [vmem:[%s0 + $0x188] sm:$0xff]
  %v73 = vld [vmem:[%s0 + $0x190] sm:$0xff]
  %v74 = vld [vmem:[%s0 + $0x198] sm:$0xff]
  %v75 = vld [vmem:[%s0 + $0x1a0] sm:$0xff]
  %v76 = vld [vmem:[%s0 + $0x1a8] sm:$0xff]
  %v77 = vld [vmem:[%s0 + $0x1b0] sm:$0xff]
  %v78 = vld [vmem:[%s0 + $0x1b8] sm:$0xff]
  %v79 = vld [vmem:[%s0 + $0x1c0] sm:$0xff]
  %v80 = vld [vmem:[%s0 + $0x1c8] sm:$0xff]
  %v81 = vld [vmem:[%s0 + $0x1d0] sm:$0xff]
  %v82 = vld [vmem:[%s0 + $0x1d8] sm:$0xff]
  %v83 = vld [vmem:[%s0 + $0x1e0] sm:$0xff]
  %v84 = vld [vmem:[%s0 + $0x1e8] sm:$0xff]
  %v85 = vld [vmem:[%s0 + $0x1f0] sm:$0xff]
  %v86 = vld [vmem:[%s0 + $0x1f8] sm:$0xff]
  %v87 = vpack.c.bf16 %v24, %v23
  %v88 = vpack.c.bf16 %v26, %v25
  %v89 = vpack.c.bf16 %v28, %v27
  %v90 = vpack.c.bf16 %v30, %v29
  %v91 = vpack.c.bf16 %v32, %v31
  %v92 = vpack.c.bf16 %v34, %v33
  %v93 = vpack.c.bf16 %v36, %v35
  %v94 = vpack.c.bf16 %v38, %v37
  %v95 = vpack.c.bf16 %v40, %v39
  %v96 = vpack.c.bf16 %v42, %v41
  %v97 = vpack.c.bf16 %v44, %v43
  %v98 = vpack.c.bf16 %v46, %v45
  %v99 = vpack.c.bf16 %v48, %v47
  %v100 = vpack.c.bf16 %v50, %v49
  %v101 = vpack.c.bf16 %v52, %v51
  %v102 = vpack.c.bf16 %v54, %v53
  %v103 = vpack.c.bf16 %v56, %v55
  %v104 = vpack.c.bf16 %v58, %v57
  %v105 = vpack.c.bf16 %v60, %v59
  %v106 = vpack.c.bf16 %v62, %v61
  %v107 = vpack.c.bf16 %v64, %v63
  %v108 = vpack.c.bf16 %v66, %v65
  %v109 = vpack.c.bf16 %v68, %v67
  %v110 = vpack.c.bf16 %v70, %v69
  %v111 = vpack.c.bf16 %v72, %v71
  %v112 = vpack.c.bf16 %v74, %v73
  %v113 = vpack.c.bf16 %v76, %v75
  %v114 = vpack.c.bf16 %v78, %v77
  %v115 = vpack.c.bf16 %v80, %v79
  %v116 = vpack.c.bf16 %v82, %v81
  %v117 = vpack.c.bf16 %v84, %v83
  %v118 = vpack.c.bf16 %v86, %v85
  %v119 = vld [vmem:[%s1] sm:$0xf]
  %v120 = vld [vmem:[%s1 + $0x4] sm:$0xf]
  %v121 = vld [vmem:[%s1 + $0x8] sm:$0xf]
  %v122 = vld [vmem:[%s1 + $0xc] sm:$0xf]
  %v123 = vld [vmem:[%s2] sm:$0x1]
  %v125 = vperm.slane %v123, 0
  %v131 = vunpack.c.l.b16 %v119
  %v132 = vunpack.c.l.b16 %v120
  %v133 = vunpack.c.l.b16 %v121
  %v134 = vunpack.c.l.b16 %v122
  %v135 = vpack.c.b16 %v132, %v131
  %v136 = vpack.c.b16 %v134, %v133
  %vm139 = vcmask 261120
  %v141 = vsel %vm139, %v87, 0
  %v144 = vsel %vm139, %v88, 0
  %v147 = vsel %vm139, %v89, 0
  %v150 = vsel %vm139, %v90, 0
  %v153 = vsel %vm139, %v91, 0
  %v156 = vsel %vm139, %v92, 0
  %v159 = vsel %vm139, %v93, 0
  %v162 = vsel %vm139, %v94, 0
  %v165 = vsel %vm139, %v95, 0
  %v168 = vsel %vm139, %v96, 0
  %v171 = vsel %vm139, %v97, 0
  %v174 = vsel %vm139, %v98, 0
  %v177 = vsel %vm139, %v99, 0
  %v180 = vsel %vm139, %v100, 0
  %v183 = vsel %vm139, %v101, 0
  %v186 = vsel %vm139, %v102, 0
  %v189 = vsel %vm139, %v103, 0
  %v192 = vsel %vm139, %v104, 0
  %v195 = vsel %vm139, %v105, 0
  %v198 = vsel %vm139, %v106, 0
  %v201 = vsel %vm139, %v107, 0
  %v204 = vsel %vm139, %v108, 0
  %v207 = vsel %vm139, %v109, 0
  %v210 = vsel %vm139, %v110, 0
  %v213 = vsel %vm139, %v111, 0
  %v216 = vsel %vm139, %v112, 0
  %v219 = vsel %vm139, %v113, 0
  %v222 = vsel %vm139, %v114, 0
  %v225 = vsel %vm139, %v115, 0
  %v228 = vsel %vm139, %v116, 0
  %v231 = vsel %vm139, %v117, 0
  %v234 = vsel %vm139, %v118, 0
  %236 = vmatpush.bf16.msra.mxu0 0
  %237 = vmatpush.bf16.msra.mxu0 0
  %238 = vmatpush.bf16.msra.mxu0 0
  %239 = vmatpush.bf16.msra.mxu0 0
  %240 = vmatpush.bf16.msra.mxu0 0
  %241 = vmatpush.bf16.msra.mxu0 0
  %242 = vmatpush.bf16.msra.mxu0 %v136
  %243 = vmatpush.bf16.msra.mxu0 %v135
  %244 = vmatmul.bf16.gmra.mxu0 %v141
  %v245 = vpop.f32.mrf.mxu0
  %v246 = vadd.f32 %v125, %v245
  %v247 = vpop.f32.mrf.mxu0
  %v248 = vadd.f32 %v125, %v247
  %249 = vmatmul.bf16.gmra.mxu0 %v144
  %v250 = vpop.f32.mrf.mxu0
  %v251 = vadd.f32 %v125, %v250
  %v252 = vpop.f32.mrf.mxu0
  %v253 = vadd.f32 %v125, %v252
  %254 = vmatmul.bf16.gmra.mxu0 %v147
  %v255 = vpop.f32.mrf.mxu0
  %v256 = vadd.f32 %v125, %v255
  %v257 = vpop.f32.mrf.mxu0
  %v258 = vadd.f32 %v125, %v257
  %259 = vmatmul.bf16.gmra.mxu0 %v150
  %v260 = vpop.f32.mrf.mxu0
  %v261 = vadd.f32 %v125, %v260
  %v262 = vpop.f32.mrf.mxu0
  %v263 = vadd.f32 %v125, %v262
  %264 = vmatmul.bf16.gmra.mxu0 %v153
  %v265 = vpop.f32.mrf.mxu0
  %v266 = vadd.f32 %v125, %v265
  %v267 = vpop.f32.mrf.mxu0
  %v268 = vadd.f32 %v125, %v267
  %269 = vmatmul.bf16.gmra.mxu0 %v156
  %v270 = vpop.f32.mrf.mxu0
  %v271 = vadd.f32 %v125, %v270
  %v272 = vpop.f32.mrf.mxu0
  %v273 = vadd.f32 %v125, %v272
  %274 = vmatmul.bf16.gmra.mxu0 %v159
  %v275 = vpop.f32.mrf.mxu0
  %v276 = vadd.f32 %v125, %v275
  %v277 = vpop.f32.mrf.mxu0
  %v278 = vadd.f32 %v125, %v277
  %279 = vmatmul.bf16.gmra.mxu0 %v162
  %v280 = vpop.f32.mrf.mxu0
  %v281 = vadd.f32 %v125, %v280
  %v282 = vpop.f32.mrf.mxu0
  %v283 = vadd.f32 %v125, %v282
  %284 = vmatmul.bf16.gmra.mxu0 %v165
  %v285 = vpop.f32.mrf.mxu0
  %v286 = vadd.f32 %v125, %v285
  %v287 = vpop.f32.mrf.mxu0
  %v288 = vadd.f32 %v125, %v287
  %289 = vmatmul.bf16.gmra.mxu0 %v168
  %v290 = vpop.f32.mrf.mxu0
  %v291 = vadd.f32 %v125, %v290
  %v292 = vpop.f32.mrf.mxu0
  %v293 = vadd.f32 %v125, %v292
  %294 = vmatmul.bf16.gmra.mxu0 %v171
  %v295 = vpop.f32.mrf.mxu0
  %v296 = vadd.f32 %v125, %v295
  %v297 = vpop.f32.mrf.mxu0
  %v298 = vadd.f32 %v125, %v297
  %299 = vmatmul.bf16.gmra.mxu0 %v174
  %v300 = vpop.f32.mrf.mxu0
  %v301 = vadd.f32 %v125, %v300
  %v302 = vpop.f32.mrf.mxu0
  %v303 = vadd.f32 %v125, %v302
  %304 = vmatmul.bf16.gmra.mxu0 %v177
  %v305 = vpop.f32.mrf.mxu0
  %v306 = vadd.f32 %v125, %v305
  %v307 = vpop.f32.mrf.mxu0
  %v308 = vadd.f32 %v125, %v307
  %309 = vmatmul.bf16.gmra.mxu0 %v180
  %v310 = vpop.f32.mrf.mxu0
  %v311 = vadd.f32 %v125, %v310
  %v312 = vpop.f32.mrf.mxu0
  %v313 = vadd.f32 %v125, %v312
  %314 = vmatmul.bf16.gmra.mxu0 %v183
  %v315 = vpop.f32.mrf.mxu0
  %v316 = vadd.f32 %v125, %v315
  %v317 = vpop.f32.mrf.mxu0
  %v318 = vadd.f32 %v125, %v317
  %319 = vmatmul.bf16.gmra.mxu0 %v186
  %v320 = vpop.f32.mrf.mxu0
  %v321 = vadd.f32 %v125, %v320
  %v322 = vpop.f32.mrf.mxu0
  %v323 = vadd.f32 %v125, %v322
  %324 = vmatmul.bf16.gmra.mxu0 %v189
  %v325 = vpop.f32.mrf.mxu0
  %v326 = vadd.f32 %v125, %v325
  %v327 = vpop.f32.mrf.mxu0
  %v328 = vadd.f32 %v125, %v327
  %329 = vmatmul.bf16.gmra.mxu0 %v192
  %v330 = vpop.f32.mrf.mxu0
  %v331 = vadd.f32 %v125, %v330
  %v332 = vpop.f32.mrf.mxu0
  %v333 = vadd.f32 %v125, %v332
  %334 = vmatmul.bf16.gmra.mxu0 %v195
  %v335 = vpop.f32.mrf.mxu0
  %v336 = vadd.f32 %v125, %v335
  %v337 = vpop.f32.mrf.mxu0
  %v338 = vadd.f32 %v125, %v337
  %339 = vmatmul.bf16.gmra.mxu0 %v198
  %v340 = vpop.f32.mrf.mxu0
  %v341 = vadd.f32 %v125, %v340
  %v342 = vpop.f32.mrf.mxu0
  %v343 = vadd.f32 %v125, %v342
  %344 = vmatmul.bf16.gmra.mxu0 %v201
  %v345 = vpop.f32.mrf.mxu0
  %v346 = vadd.f32 %v125, %v345
  %v347 = vpop.f32.mrf.mxu0
  %v348 = vadd.f32 %v125, %v347
  %349 = vmatmul.bf16.gmra.mxu0 %v204
  %v350 = vpop.f32.mrf.mxu0
  %v351 = vadd.f32 %v125, %v350
  %v352 = vpop.f32.mrf.mxu0
  %v353 = vadd.f32 %v125, %v352
  %354 = vmatmul.bf16.gmra.mxu0 %v207
  %v355 = vpop.f32.mrf.mxu0
  %v356 = vadd.f32 %v125, %v355
  %v357 = vpop.f32.mrf.mxu0
  %v358 = vadd.f32 %v125, %v357
  %359 = vmatmul.bf16.gmra.mxu0 %v210
  %v360 = vpop.f32.mrf.mxu0
  %v361 = vadd.f32 %v125, %v360
  %v362 = vpop.f32.mrf.mxu0
  %v363 = vadd.f32 %v125, %v362
  %364 = vmatmul.bf16.gmra.mxu0 %v213
  %v365 = vpop.f32.mrf.mxu0
  %v366 = vadd.f32 %v125, %v365
  %v367 = vpop.f32.mrf.mxu0
  %v368 = vadd.f32 %v125, %v367
  %369 = vmatmul.bf16.gmra.mxu0 %v216
  %v370 = vpop.f32.mrf.mxu0
  %v371 = vadd.f32 %v125, %v370
  %v372 = vpop.f32.mrf.mxu0
  %v373 = vadd.f32 %v125, %v372
  %374 = vmatmul.bf16.gmra.mxu0 %v219
  %v375 = vpop.f32.mrf.mxu0
  %v376 = vadd.f32 %v125, %v375
  %v377 = vpop.f32.mrf.mxu0
  %v378 = vadd.f32 %v125, %v377
  %379 = vmatmul.bf16.gmra.mxu0 %v222
  %v380 = vpop.f32.mrf.mxu0
  %v381 = vadd.f32 %v125, %v380
  %v382 = vpop.f32.mrf.mxu0
  %v383 = vadd.f32 %v125, %v382
  %384 = vmatmul.bf16.gmra.mxu0 %v225
  %v385 = vpop.f32.mrf.mxu0
  %v386 = vadd.f32 %v125, %v385
  %v387 = vpop.f32.mrf.mxu0
  %v388 = vadd.f32 %v125, %v387
  %389 = vmatmul.bf16.gmra.mxu0 %v228
  %v390 = vpop.f32.mrf.mxu0
  %v391 = vadd.f32 %v125, %v390
  %v392 = vpop.f32.mrf.mxu0
  %v393 = vadd.f32 %v125, %v392
  %394 = vmatmul.bf16.gmra.mxu0 %v231
  %v395 = vpop.f32.mrf.mxu0
  %v396 = vadd.f32 %v125, %v395
  %v397 = vpop.f32.mrf.mxu0
  %v398 = vadd.f32 %v125, %v397
  %399 = vmatmul.bf16.gmra.mxu0 %v234
  %v400 = vpop.f32.mrf.mxu0
  %v401 = vadd.f32 %v125, %v400
  %v402 = vpop.f32.mrf.mxu0
  %v403 = vadd.f32 %v125, %v402
  %404 = vdwg.mxu0
  %vm405 = vcmask 523264
  %406 = vst.msk [vmem:[%s5] sm:$0xff] %vm405, %v246
  %407 = vst.msk [vmem:[%s5 + $0x8] sm:$0xff] %vm405, %v248
  %408 = vst.msk [vmem:[%s5 + $0x10] sm:$0xff] %vm405, %v251
  %409 = vst.msk [vmem:[%s5 + $0x18] sm:$0xff] %vm405, %v253
  %410 = vst.msk [vmem:[%s5 + $0x20] sm:$0xff] %vm405, %v256
  %411 = vst.msk [vmem:[%s5 + $0x28] sm:$0xff] %vm405, %v258
  %412 = vst.msk [vmem:[%s5 + $0x30] sm:$0xff] %vm405, %v261
  %413 = vst.msk [vmem:[%s5 + $0x38] sm:$0xff] %vm405, %v263
  %414 = vst.msk [vmem:[%s5 + $0x40] sm:$0xff] %vm405, %v266
  %415 = vst.msk [vmem:[%s5 + $0x48] sm:$0xff] %vm405, %v268
  %416 = vst.msk [vmem:[%s5 + $0x50] sm:$0xff] %vm405, %v271
  %417 = vst.msk [vmem:[%s5 + $0x58] sm:$0xff] %vm405, %v273
  %418 = vst.msk [vmem:[%s5 + $0x60] sm:$0xff] %vm405, %v276
  %419 = vst.msk [vmem:[%s5 + $0x68] sm:$0xff] %vm405, %v278
  %420 = vst.msk [vmem:[%s5 + $0x70] sm:$0xff] %vm405, %v281
  %421 = vst.msk [vmem:[%s5 + $0x78] sm:$0xff] %vm405, %v283
  %422 = vst.msk [vmem:[%s5 + $0x80] sm:$0xff] %vm405, %v286
  %423 = vst.msk [vmem:[%s5 + $0x88] sm:$0xff] %vm405, %v288
  %424 = vst.msk [vmem:[%s5 + $0x90] sm:$0xff] %vm405, %v291
  %425 = vst.msk [vmem:[%s5 + $0x98] sm:$0xff] %vm405, %v293
  %426 = vst.msk [vmem:[%s5 + $0xa0] sm:$0xff] %vm405, %v296
  %427 = vst.msk [vmem:[%s5 + $0xa8] sm:$0xff] %vm405, %v298
  %428 = vst.msk [vmem:[%s5 + $0xb0] sm:$0xff] %vm405, %v301
  %429 = vst.msk [vmem:[%s5 + $0xb8] sm:$0xff] %vm405, %v303
  %430 = vst.msk [vmem:[%s5 + $0xc0] sm:$0xff] %vm405, %v306
  %431 = vst.msk [vmem:[%s5 + $0xc8] sm:$0xff] %vm405, %v308
  %432 = vst.msk [vmem:[%s5 + $0xd0] sm:$0xff] %vm405, %v311
  %433 = vst.msk [vmem:[%s5 + $0xd8] sm:$0xff] %vm405, %v313
  %434 = vst.msk [vmem:[%s5 + $0xe0] sm:$0xff] %vm405, %v316
  %435 = vst.msk [vmem:[%s5 + $0xe8] sm:$0xff] %vm405, %v318
  %436 = vst.msk [vmem:[%s5 + $0xf0] sm:$0xff] %vm405, %v321
  %437 = vst.msk [vmem:[%s5 + $0xf8] sm:$0xff] %vm405, %v323
  %438 = vst.msk [vmem:[%s5 + $0x100] sm:$0xff] %vm405, %v326
  %439 = vst.msk [vmem:[%s5 + $0x108] sm:$0xff] %vm405, %v328
  %440 = vst.msk [vmem:[%s5 + $0x110] sm:$0xff] %vm405, %v331
  %441 = vst.msk [vmem:[%s5 + $0x118] sm:$0xff] %vm405, %v333
  %442 = vst.msk [vmem:[%s5 + $0x120] sm:$0xff] %vm405, %v336
  %443 = vst.msk [vmem:[%s5 + $0x128] sm:$0xff] %vm405, %v338
  %444 = vst.msk [vmem:[%s5 + $0x130] sm:$0xff] %vm405, %v341
  %445 = vst.msk [vmem:[%s5 + $0x138] sm:$0xff] %vm405, %v343
  %446 = vst.msk [vmem:[%s5 + $0x140] sm:$0xff] %vm405, %v346
  %447 = vst.msk [vmem:[%s5 + $0x148] sm:$0xff] %vm405, %v348
  %448 = vst.msk [vmem:[%s5 + $0x150] sm:$0xff] %vm405, %v351
  %449 = vst.msk [vmem:[%s5 + $0x158] sm:$0xff] %vm405, %v353
  %450 = vst.msk [vmem:[%s5 + $0x160] sm:$0xff] %vm405, %v356
  %451 = vst.msk [vmem:[%s5 + $0x168] sm:$0xff] %vm405, %v358
  %452 = vst.msk [vmem:[%s5 + $0x170] sm:$0xff] %vm405, %v361
  %453 = vst.msk [vmem:[%s5 + $0x178] sm:$0xff] %vm405, %v363
  %454 = vst.msk [vmem:[%s5 + $0x180] sm:$0xff] %vm405, %v366
  %455 = vst.msk [vmem:[%s5 + $0x188] sm:$0xff] %vm405, %v368
  %456 = vst.msk [vmem:[%s5 + $0x190] sm:$0xff] %vm405, %v371
  %457 = vst.msk [vmem:[%s5 + $0x198] sm:$0xff] %vm405, %v373
  %458 = vst.msk [vmem:[%s5 + $0x1a0] sm:$0xff] %vm405, %v376
  %459 = vst.msk [vmem:[%s5 + $0x1a8] sm:$0xff] %vm405, %v378
  %460 = vst.msk [vmem:[%s5 + $0x1b0] sm:$0xff] %vm405, %v381
  %461 = vst.msk [vmem:[%s5 + $0x1b8] sm:$0xff] %vm405, %v383
  %462 = vst.msk [vmem:[%s5 + $0x1c0] sm:$0xff] %vm405, %v386
  %463 = vst.msk [vmem:[%s5 + $0x1c8] sm:$0xff] %vm405, %v388
  %464 = vst.msk [vmem:[%s5 + $0x1d0] sm:$0xff] %vm405, %v391
  %465 = vst.msk [vmem:[%s5 + $0x1d8] sm:$0xff] %vm405, %v393
  %466 = vst.msk [vmem:[%s5 + $0x1e0] sm:$0xff] %vm405, %v396
  %467 = vst.msk [vmem:[%s5 + $0x1e8] sm:$0xff] %vm405, %v398
  %468 = vst.msk [vmem:[%s5 + $0x1f0] sm:$0xff] %vm405, %v401
  %469 = vst.msk [vmem:[%s5 + $0x1f8] sm:$0xff] %vm405, %v403
  %v470 = vpack.c.bf16 %v248, %v246
  %v471 = vpack.c.bf16 %v253, %v251
  %v472 = vpack.c.bf16 %v258, %v256
  %v473 = vpack.c.bf16 %v263, %v261
  %v474 = vpack.c.bf16 %v268, %v266
  %v475 = vpack.c.bf16 %v273, %v271
  %v476 = vpack.c.bf16 %v278, %v276
  %v477 = vpack.c.bf16 %v283, %v281
  %v478 = vpack.c.bf16 %v288, %v286
  %v479 = vpack.c.bf16 %v293, %v291
  %v480 = vpack.c.bf16 %v298, %v296
  %v481 = vpack.c.bf16 %v303, %v301
  %v482 = vpack.c.bf16 %v308, %v306
  %v483 = vpack.c.bf16 %v313, %v311
  %v484 = vpack.c.bf16 %v318, %v316
  %v485 = vpack.c.bf16 %v323, %v321
  %v486 = vpack.c.bf16 %v328, %v326
  %v487 = vpack.c.bf16 %v333, %v331
  %v488 = vpack.c.bf16 %v338, %v336
  %v489 = vpack.c.bf16 %v343, %v341
  %v490 = vpack.c.bf16 %v348, %v346
  %v491 = vpack.c.bf16 %v353, %v351
  %v492 = vpack.c.bf16 %v358, %v356
  %v493 = vpack.c.bf16 %v363, %v361
  %v494 = vpack.c.bf16 %v368, %v366
  %v495 = vpack.c.bf16 %v373, %v371
  %v496 = vpack.c.bf16 %v378, %v376
  %v497 = vpack.c.bf16 %v383, %v381
  %v498 = vpack.c.bf16 %v388, %v386
  %v499 = vpack.c.bf16 %v393, %v391
  %v500 = vpack.c.bf16 %v398, %v396
  %v501 = vpack.c.bf16 %v403, %v401
  %v502 = vld [vmem:[%s3] sm:$0xf]
  %v503 = vld [vmem:[%s3 + $0x4] sm:$0xf]
  %v504 = vld [vmem:[%s3 + $0x8] sm:$0xf]
  %v505 = vld [vmem:[%s3 + $0xc] sm:$0xf]
  %v506 = vld [vmem:[%s3 + $0x10] sm:$0xf]
  %v507 = vld [vmem:[%s3 + $0x14] sm:$0xf]
  %v508 = vld [vmem:[%s3 + $0x18] sm:$0xf]
  %v509 = vld [vmem:[%s3 + $0x1c] sm:$0xf]
  %v510 = vld [vmem:[%s4] sm:$0x1]
  %v512 = vperm.slane %v510, 0
  %v522 = vunpack.c.l.b16 %v502
  %v523 = vunpack.c.l.b16 %v503
  %v524 = vunpack.c.l.b16 %v504
  %v525 = vunpack.c.l.b16 %v505
  %v526 = vunpack.c.l.b16 %v506
  %v527 = vunpack.c.l.b16 %v507
  %v528 = vunpack.c.l.b16 %v508
  %v529 = vunpack.c.l.b16 %v509
  %v530 = vpack.c.b16 %v523, %v522
  %v531 = vpack.c.b16 %v525, %v524
  %v532 = vpack.c.b16 %v527, %v526
  %v533 = vpack.c.b16 %v529, %v528
  %v539 = vsel %vm405, %v470, 0
  %v542 = vsel %vm405, %v471, 0
  %v545 = vsel %vm405, %v472, 0
  %v548 = vsel %vm405, %v473, 0
  %v551 = vsel %vm405, %v474, 0
  %v554 = vsel %vm405, %v475, 0
  %v557 = vsel %vm405, %v476, 0
  %v560 = vsel %vm405, %v477, 0
  %v563 = vsel %vm405, %v478, 0
  %v566 = vsel %vm405, %v479, 0
  %v569 = vsel %vm405, %v480, 0
  %v572 = vsel %vm405, %v481, 0
  %v575 = vsel %vm405, %v482, 0
  %v578 = vsel %vm405, %v483, 0
  %v581 = vsel %vm405, %v484, 0
  %v584 = vsel %vm405, %v485, 0
  %v587 = vsel %vm405, %v486, 0
  %v590 = vsel %vm405, %v487, 0
  %v593 = vsel %vm405, %v488, 0
  %v596 = vsel %vm405, %v489, 0
  %v599 = vsel %vm405, %v490, 0
  %v602 = vsel %vm405, %v491, 0
  %v605 = vsel %vm405, %v492, 0
  %v608 = vsel %vm405, %v493, 0
  %v611 = vsel %vm405, %v494, 0
  %v614 = vsel %vm405, %v495, 0
  %v617 = vsel %vm405, %v496, 0
  %v620 = vsel %vm405, %v497, 0
  %v623 = vsel %vm405, %v498, 0
  %v626 = vsel %vm405, %v499, 0
  %v629 = vsel %vm405, %v500, 0
  %v632 = vsel %vm405, %v501, 0
  %634 = vmatpush.bf16.msra.mxu0 0
  %635 = vmatpush.bf16.msra.mxu0 0
  %636 = vmatpush.bf16.msra.mxu0 0
  %637 = vmatpush.bf16.msra.mxu0 0
  %638 = vmatpush.bf16.msra.mxu0 %v533
  %639 = vmatpush.bf16.msra.mxu0 %v532
  %640 = vmatpush.bf16.msra.mxu0 %v531
  %641 = vmatpush.bf16.msra.mxu0 %v530
  %642 = vmatmul.bf16.gmra.mxu0 %v539
  %v643 = vpop.f32.mrf.mxu0
  %v644 = vadd.f32 %v512, %v643
  %v645 = vpop.f32.mrf.mxu0
  %v646 = vadd.f32 %v512, %v645
  %647 = vmatmul.bf16.gmra.mxu0 %v542
  %v648 = vpop.f32.mrf.mxu0
  %v649 = vadd.f32 %v512, %v648
  %v650 = vpop.f32.mrf.mxu0
  %v651 = vadd.f32 %v512, %v650
  %652 = vmatmul.bf16.gmra.mxu0 %v545
  %v653 = vpop.f32.mrf.mxu0
  %v654 = vadd.f32 %v512, %v653
  %v655 = vpop.f32.mrf.mxu0
  %v656 = vadd.f32 %v512, %v655
  %657 = vmatmul.bf16.gmra.mxu0 %v548
  %v658 = vpop.f32.mrf.mxu0
  %v659 = vadd.f32 %v512, %v658
  %v660 = vpop.f32.mrf.mxu0
  %v661 = vadd.f32 %v512, %v660
  %662 = vmatmul.bf16.gmra.mxu0 %v551
  %v663 = vpop.f32.mrf.mxu0
  %v664 = vadd.f32 %v512, %v663
  %v665 = vpop.f32.mrf.mxu0
  %v666 = vadd.f32 %v512, %v665
  %667 = vmatmul.bf16.gmra.mxu0 %v554
  %v668 = vpop.f32.mrf.mxu0
  %v669 = vadd.f32 %v512, %v668
  %v670 = vpop.f32.mrf.mxu0
  %v671 = vadd.f32 %v512, %v670
  %672 = vmatmul.bf16.gmra.mxu0 %v557
  %v673 = vpop.f32.mrf.mxu0
  %v674 = vadd.f32 %v512, %v673
  %v675 = vpop.f32.mrf.mxu0
  %v676 = vadd.f32 %v512, %v675
  %677 = vmatmul.bf16.gmra.mxu0 %v560
  %v678 = vpop.f32.mrf.mxu0
  %v679 = vadd.f32 %v512, %v678
  %v680 = vpop.f32.mrf.mxu0
  %v681 = vadd.f32 %v512, %v680
  %682 = vmatmul.bf16.gmra.mxu0 %v563
  %v683 = vpop.f32.mrf.mxu0
  %v684 = vadd.f32 %v512, %v683
  %v685 = vpop.f32.mrf.mxu0
  %v686 = vadd.f32 %v512, %v685
  %687 = vmatmul.bf16.gmra.mxu0 %v566
  %v688 = vpop.f32.mrf.mxu0
  %v689 = vadd.f32 %v512, %v688
  %v690 = vpop.f32.mrf.mxu0
  %v691 = vadd.f32 %v512, %v690
  %692 = vmatmul.bf16.gmra.mxu0 %v569
  %v693 = vpop.f32.mrf.mxu0
  %v694 = vadd.f32 %v512, %v693
  %v695 = vpop.f32.mrf.mxu0
  %v696 = vadd.f32 %v512, %v695
  %697 = vmatmul.bf16.gmra.mxu0 %v572
  %v698 = vpop.f32.mrf.mxu0
  %v699 = vadd.f32 %v512, %v698
  %v700 = vpop.f32.mrf.mxu0
  %v701 = vadd.f32 %v512, %v700
  %702 = vmatmul.bf16.gmra.mxu0 %v575
  %v703 = vpop.f32.mrf.mxu0
  %v704 = vadd.f32 %v512, %v703
  %v705 = vpop.f32.mrf.mxu0
  %v706 = vadd.f32 %v512, %v705
  %707 = vmatmul.bf16.gmra.mxu0 %v578
  %v708 = vpop.f32.mrf.mxu0
  %v709 = vadd.f32 %v512, %v708
  %v710 = vpop.f32.mrf.mxu0
  %v711 = vadd.f32 %v512, %v710
  %712 = vmatmul.bf16.gmra.mxu0 %v581
  %v713 = vpop.f32.mrf.mxu0
  %v714 = vadd.f32 %v512, %v713
  %v715 = vpop.f32.mrf.mxu0
  %v716 = vadd.f32 %v512, %v715
  %717 = vmatmul.bf16.gmra.mxu0 %v584
  %v718 = vpop.f32.mrf.mxu0
  %v719 = vadd.f32 %v512, %v718
  %v720 = vpop.f32.mrf.mxu0
  %v721 = vadd.f32 %v512, %v720
  %722 = vmatmul.bf16.gmra.mxu0 %v587
  %v723 = vpop.f32.mrf.mxu0
  %v724 = vadd.f32 %v512, %v723
  %v725 = vpop.f32.mrf.mxu0
  %v726 = vadd.f32 %v512, %v725
  %727 = vmatmul.bf16.gmra.mxu0 %v590
  %v728 = vpop.f32.mrf.mxu0
  %v729 = vadd.f32 %v512, %v728
  %v730 = vpop.f32.mrf.mxu0
  %v731 = vadd.f32 %v512, %v730
  %732 = vmatmul.bf16.gmra.mxu0 %v593
  %v733 = vpop.f32.mrf.mxu0
  %v734 = vadd.f32 %v512, %v733
  %v735 = vpop.f32.mrf.mxu0
  %v736 = vadd.f32 %v512, %v735
  %737 = vmatmul.bf16.gmra.mxu0 %v596
  %v738 = vpop.f32.mrf.mxu0
  %v739 = vadd.f32 %v512, %v738
  %v740 = vpop.f32.mrf.mxu0
  %v741 = vadd.f32 %v512, %v740
  %742 = vmatmul.bf16.gmra.mxu0 %v599
  %v743 = vpop.f32.mrf.mxu0
  %v744 = vadd.f32 %v512, %v743
  %v745 = vpop.f32.mrf.mxu0
  %v746 = vadd.f32 %v512, %v745
  %747 = vmatmul.bf16.gmra.mxu0 %v602
  %v748 = vpop.f32.mrf.mxu0
  %v749 = vadd.f32 %v512, %v748
  %v750 = vpop.f32.mrf.mxu0
  %v751 = vadd.f32 %v512, %v750
  %752 = vmatmul.bf16.gmra.mxu0 %v605
  %v753 = vpop.f32.mrf.mxu0
  %v754 = vadd.f32 %v512, %v753
  %v755 = vpop.f32.mrf.mxu0
  %v756 = vadd.f32 %v512, %v755
  %757 = vmatmul.bf16.gmra.mxu0 %v608
  %v758 = vpop.f32.mrf.mxu0
  %v759 = vadd.f32 %v512, %v758
  %v760 = vpop.f32.mrf.mxu0
  %v761 = vadd.f32 %v512, %v760
  %762 = vmatmul.bf16.gmra.mxu0 %v611
  %v763 = vpop.f32.mrf.mxu0
  %v764 = vadd.f32 %v512, %v763
  %v765 = vpop.f32.mrf.mxu0
  %v766 = vadd.f32 %v512, %v765
  %767 = vmatmul.bf16.gmra.mxu0 %v614
  %v768 = vpop.f32.mrf.mxu0
  %v769 = vadd.f32 %v512, %v768
  %v770 = vpop.f32.mrf.mxu0
  %v771 = vadd.f32 %v512, %v770
  %772 = vmatmul.bf16.gmra.mxu0 %v617
  %v773 = vpop.f32.mrf.mxu0
  %v774 = vadd.f32 %v512, %v773
  %v775 = vpop.f32.mrf.mxu0
  %v776 = vadd.f32 %v512, %v775
  %777 = vmatmul.bf16.gmra.mxu0 %v620
  %v778 = vpop.f32.mrf.mxu0
  %v779 = vadd.f32 %v512, %v778
  %v780 = vpop.f32.mrf.mxu0
  %v781 = vadd.f32 %v512, %v780
  %782 = vmatmul.bf16.gmra.mxu0 %v623
  %v783 = vpop.f32.mrf.mxu0
  %v784 = vadd.f32 %v512, %v783
  %v785 = vpop.f32.mrf.mxu0
  %v786 = vadd.f32 %v512, %v785
  %787 = vmatmul.bf16.gmra.mxu0 %v626
  %v788 = vpop.f32.mrf.mxu0
  %v789 = vadd.f32 %v512, %v788
  %v790 = vpop.f32.mrf.mxu0
  %v791 = vadd.f32 %v512, %v790
  %792 = vmatmul.bf16.gmra.mxu0 %v629
  %v793 = vpop.f32.mrf.mxu0
  %v794 = vadd.f32 %v512, %v793
  %v795 = vpop.f32.mrf.mxu0
  %v796 = vadd.f32 %v512, %v795
  %797 = vmatmul.bf16.gmra.mxu0 %v632
  %v798 = vpop.f32.mrf.mxu0
  %v799 = vadd.f32 %v512, %v798
  %v800 = vpop.f32.mrf.mxu0
  %v801 = vadd.f32 %v512, %v800
  %802 = vdwg.mxu0
  %vm803 = vcmask 392192
  %804 = vst.msk [vmem:[%s6] sm:$0xff] %vm803, %v644
  %805 = vst.msk [vmem:[%s6 + $0x8] sm:$0xff] %vm803, %v646
  %806 = vst.msk [vmem:[%s6 + $0x10] sm:$0xff] %vm803, %v649
  %807 = vst.msk [vmem:[%s6 + $0x18] sm:$0xff] %vm803, %v651
  %808 = vst.msk [vmem:[%s6 + $0x20] sm:$0xff] %vm803, %v654
  %809 = vst.msk [vmem:[%s6 + $0x28] sm:$0xff] %vm803, %v656
  %810 = vst.msk [vmem:[%s6 + $0x30] sm:$0xff] %vm803, %v659
  %811 = vst.msk [vmem:[%s6 + $0x38] sm:$0xff] %vm803, %v661
  %812 = vst.msk [vmem:[%s6 + $0x40] sm:$0xff] %vm803, %v664
  %813 = vst.msk [vmem:[%s6 + $0x48] sm:$0xff] %vm803, %v666
  %814 = vst.msk [vmem:[%s6 + $0x50] sm:$0xff] %vm803, %v669
  %815 = vst.msk [vmem:[%s6 + $0x58] sm:$0xff] %vm803, %v671
  %816 = vst.msk [vmem:[%s6 + $0x60] sm:$0xff] %vm803, %v674
  %817 = vst.msk [vmem:[%s6 + $0x68] sm:$0xff] %vm803, %v676
  %818 = vst.msk [vmem:[%s6 + $0x70] sm:$0xff] %vm803, %v679
  %819 = vst.msk [vmem:[%s6 + $0x78] sm:$0xff] %vm803, %v681
  %820 = vst.msk [vmem:[%s6 + $0x80] sm:$0xff] %vm803, %v684
  %821 = vst.msk [vmem:[%s6 + $0x88] sm:$0xff] %vm803, %v686
  %822 = vst.msk [vmem:[%s6 + $0x90] sm:$0xff] %vm803, %v689
  %823 = vst.msk [vmem:[%s6 + $0x98] sm:$0xff] %vm803, %v691
  %824 = vst.msk [vmem:[%s6 + $0xa0] sm:$0xff] %vm803, %v694
  %825 = vst.msk [vmem:[%s6 + $0xa8] sm:$0xff] %vm803, %v696
  %826 = vst.msk [vmem:[%s6 + $0xb0] sm:$0xff] %vm803, %v699
  %827 = vst.msk [vmem:[%s6 + $0xb8] sm:$0xff] %vm803, %v701
  %828 = vst.msk [vmem:[%s6 + $0xc0] sm:$0xff] %vm803, %v704
  %829 = vst.msk [vmem:[%s6 + $0xc8] sm:$0xff] %vm803, %v706
  %830 = vst.msk [vmem:[%s6 + $0xd0] sm:$0xff] %vm803, %v709
  %831 = vst.msk [vmem:[%s6 + $0xd8] sm:$0xff] %vm803, %v711
  %832 = vst.msk [vmem:[%s6 + $0xe0] sm:$0xff] %vm803, %v714
  %833 = vst.msk [vmem:[%s6 + $0xe8] sm:$0xff] %vm803, %v716
  %834 = vst.msk [vmem:[%s6 + $0xf0] sm:$0xff] %vm803, %v719
  %835 = vst.msk [vmem:[%s6 + $0xf8] sm:$0xff] %vm803, %v721
  %836 = vst.msk [vmem:[%s6 + $0x100] sm:$0xff] %vm803, %v724
  %837 = vst.msk [vmem:[%s6 + $0x108] sm:$0xff] %vm803, %v726
  %838 = vst.msk [vmem:[%s6 + $0x110] sm:$0xff] %vm803, %v729
  %839 = vst.msk [vmem:[%s6 + $0x118] sm:$0xff] %vm803, %v731
  %840 = vst.msk [vmem:[%s6 + $0x120] sm:$0xff] %vm803, %v734
  %841 = vst.msk [vmem:[%s6 + $0x128] sm:$0xff] %vm803, %v736
  %842 = vst.msk [vmem:[%s6 + $0x130] sm:$0xff] %vm803, %v739
  %843 = vst.msk [vmem:[%s6 + $0x138] sm:$0xff] %vm803, %v741
  %844 = vst.msk [vmem:[%s6 + $0x140] sm:$0xff] %vm803, %v744
  %845 = vst.msk [vmem:[%s6 + $0x148] sm:$0xff] %vm803, %v746
  %846 = vst.msk [vmem:[%s6 + $0x150] sm:$0xff] %vm803, %v749
  %847 = vst.msk [vmem:[%s6 + $0x158] sm:$0xff] %vm803, %v751
  %848 = vst.msk [vmem:[%s6 + $0x160] sm:$0xff] %vm803, %v754
  %849 = vst.msk [vmem:[%s6 + $0x168] sm:$0xff] %vm803, %v756
  %850 = vst.msk [vmem:[%s6 + $0x170] sm:$0xff] %vm803, %v759
  %851 = vst.msk [vmem:[%s6 + $0x178] sm:$0xff] %vm803, %v761
  %852 = vst.msk [vmem:[%s6 + $0x180] sm:$0xff] %vm803, %v764
  %853 = vst.msk [vmem:[%s6 + $0x188] sm:$0xff] %vm803, %v766
  %854 = vst.msk [vmem:[%s6 + $0x190] sm:$0xff] %vm803, %v769
  %855 = vst.msk [vmem:[%s6 + $0x198] sm:$0xff] %vm803, %v771
  %856 = vst.msk [vmem:[%s6 + $0x1a0] sm:$0xff] %vm803, %v774
  %857 = vst.msk [vmem:[%s6 + $0x1a8] sm:$0xff] %vm803, %v776
  %858 = vst.msk [vmem:[%s6 + $0x1b0] sm:$0xff] %vm803, %v779
  %859 = vst.msk [vmem:[%s6 + $0x1b8] sm:$0xff] %vm803, %v781
  %860 = vst.msk [vmem:[%s6 + $0x1c0] sm:$0xff] %vm803, %v784
  %861 = vst.msk [vmem:[%s6 + $0x1c8] sm:$0xff] %vm803, %v786
  %862 = vst.msk [vmem:[%s6 + $0x1d0] sm:$0xff] %vm803, %v789
  %863 = vst.msk [vmem:[%s6 + $0x1d8] sm:$0xff] %vm803, %v791
  %864 = vst.msk [vmem:[%s6 + $0x1e0] sm:$0xff] %vm803, %v794
  %865 = vst.msk [vmem:[%s6 + $0x1e8] sm:$0xff] %vm803, %v796
  %866 = vst.msk [vmem:[%s6 + $0x1f0] sm:$0xff] %vm803, %v799
  %867 = vst.msk [vmem:[%s6 + $0x1f8] sm:$0xff] %vm803, %v801
  // Predicated region
  $region22: #{tpu_custom_call.1} parent=0 // pred_check
    _
  $region23: #{tpu_custom_call.1} parent=0 // pred_check_branch
    %869 = sbr.rel (0) target = $region25
  $region24: #{tpu_custom_call.1} parent=0 // pred_region
    _
  $region25: #{tpu_custom_call.1} parent=0 // pred_fallthru
    _
  // Predicated region
  $region26: #{tpu_custom_call.1} parent=0 // pred_check
    _
  $region27: #{tpu_custom_call.1} parent=0 // pred_check_branch
    %871 = sbr.rel (0) target = $region29
  $region28: #{tpu_custom_call.1} parent=0 // pred_region
    _
  $region29: #{tpu_custom_call.1} parent=0 // pred_fallthru
    _
  // Predicated region
  $region30: #{tpu_custom_call.1} parent=0 // pred_check
    _
  $region31: #{tpu_custom_call.1} parent=0 // pred_check_branch
    %873 = sbr.rel (0) target = $region33
  $region32: #{tpu_custom_call.1} parent=0 // pred_region
    _
  $region33: #{tpu_custom_call.1} parent=0 // pred_fallthru
    _
  // Predicated region
  $region34: #{tpu_custom_call.1} parent=0 // pred_check
    _
  $region35: #{tpu_custom_call.1} parent=0 // pred_check_branch
    %875 = sbr.rel (0) target = $region37
  $region36: #{tpu_custom_call.1} parent=0 // pred_region
    _
  $region37: #{tpu_custom_call.1} parent=0 // pred_fallthru
    _

</llo_original>
